<compile_context>
chip_gen: v7x
topology: tpu7x:2x2x1
jax: 0.10.0
libtpu: 0.0.40
codegen_flags: <defaults>
</compile_context>

<pallas_src>
import jax
import jax.numpy as jnp
from jax.experimental import pallas as pl
from jax.experimental.pallas import tpu as pltpu


def _ae_kernel(x_ref, we_ref, be_ref, wm_ref, bm_ref, wd_ref, bd_ref,
               recon_ref, z_ref):
    """Fused AE forward: encoder -> map_latent -> decoder, all on the MXU.

    x arrives f32 straight from HBM and is cast to bf16 in-kernel (VPU cast is
    hidden under DMA/MXU slack).  All three matmuls use bf16 operands with f32
    accumulation (preferred_element_type); bias add and tanh stay in f32.
    """
    x = x_ref[...].astype(jnp.bfloat16)              # (TM, In)

    # encoder: tanh(x @ W_enc + b_enc)
    h = jnp.tanh(
        jnp.dot(x, we_ref[...], preferred_element_type=jnp.float32)
        + be_ref[...])

    # map_latent: z = h @ W_map + b_map
    z = (jnp.dot(h.astype(jnp.bfloat16), wm_ref[...],
                 preferred_element_type=jnp.float32)
         + bm_ref[...])
    z_ref[...] = z.astype(z_ref.dtype)

    # decoder: recon = z @ W_dec + b_dec
    recon = (jnp.dot(z.astype(jnp.bfloat16), wd_ref[...],
                     preferred_element_type=jnp.float32)
             + bd_ref[...])
    recon_ref[...] = recon.astype(recon_ref.dtype)


def _round_up(n, m):
    return ((n + m - 1) // m) * m


def _choose_row_tile(batch, block_m):
    """Pick the batch (row) tile size tm.

    * batch <= block_m and small: one tile equal to the batch extent
      (block == full dim, always a legal layout, no masking).
    * batch <= block_m but >= 512 rows: split into >= 2 grid steps, 256-row
      aligned, so v7x's two TensorCores both get work.
    * batch > block_m: tile aligned to 256 rows (full-height v6e/v7x MXU
      passes) when block_m allows, otherwise to 16 (bf16 outputs pack two
      rows per sublane).
    """
    block_m = max(16, block_m)
    if batch <= block_m:
        if batch >= 512:
            return _round_up(pl.cdiv(batch, 2), 256)
        return batch
    if block_m >= 256:
        return (block_m // 256) * 256
    return _round_up(block_m, 16)


def ae_forward(x, params, *, block_m=1024, out_dtype=jnp.bfloat16):
    """AE.forward: returns (recon, z, z_loss).

    `out_dtype` controls recon/z storage dtype (bf16 default to halve output
    HBM traffic; pass jnp.float32 if downstream needs full precision).
    """
    w_enc, b_enc, w_map, b_map, w_dec, b_dec = params
    batch, input_size = x.shape
    enc_hidden = w_enc.shape[1]
    latent = w_map.shape[1]

    tm = _choose_row_tile(batch, block_m)
    grid = (pl.cdiv(batch, tm),)
    out_bytes = jnp.dtype(out_dtype).itemsize

    # Activations: tiled along batch (Pallas masks the boundary block if
    # batch % tm != 0 — rows are independent, so this is safe).
    def act_spec(cols):
        return pl.BlockSpec((tm, cols), lambda i: (i, 0))

    # Weights/biases: constant index_map -> DMA'd once, VMEM-resident across
    # the whole grid.
    def resident_spec(rows, cols):
        return pl.BlockSpec((rows, cols), lambda i: (0, 0))

    flops = 2 * batch * (input_size * enc_hidden
                         + enc_hidden * latent
                         + latent * input_size)
    bytes_accessed = (
        x.size * 4                                          # f32 input
        + (w_enc.size + w_map.size + w_dec.size) * 2        # bf16 weights
        + (b_enc.size + b_map.size + b_dec.size) * 4        # f32 biases
        + batch * (input_size + latent) * out_bytes)        # outputs

    # Explicit scoped-VMEM budget: double-buffered activation tiles + weights
    # + f32 intermediates, with 2x headroom; capped at 64 MiB (v7x physical).
    per_step = tm * (input_size * 4 + input_size * out_bytes
                     + latent * out_bytes)
    resident_bytes = ((w_enc.size + w_map.size + w_dec.size) * 2
                      + (b_enc.size + b_map.size + b_dec.size) * 4)
    scratch = tm * (enc_hidden + latent + input_size) * 4
    vmem_limit = int(min(64 << 20,
                         max(32 << 20,
                             2 * (2 * per_step + 2 * resident_bytes + scratch))))

    recon, z = pl.pallas_call(
        _ae_kernel,
        out_shape=(
            jax.ShapeDtypeStruct((batch, input_size), out_dtype),
            jax.ShapeDtypeStruct((batch, latent), out_dtype),
        ),
        grid=grid,
        in_specs=[
            act_spec(input_size),                    # x (f32, cast in-kernel)
            resident_spec(input_size, enc_hidden),   # W_enc (bf16)
            resident_spec(1, enc_hidden),            # b_enc (f32)
            resident_spec(enc_hidden, latent),       # W_map (bf16)
            resident_spec(1, latent),                # b_map (f32)
            resident_spec(latent, input_size),       # W_dec (bf16)
            resident_spec(1, input_size),            # b_dec (f32)
        ],
        out_specs=(act_spec(input_size), act_spec(latent)),
        compiler_params=pltpu.CompilerParams(
            dimension_semantics=("parallel",),       # v7x: shard batch over 2 TCs
            vmem_limit_bytes=vmem_limit),
        cost_estimate=pl.CostEstimate(
            flops=flops,
            transcendentals=batch * enc_hidden,      # tanh
            bytes_accessed=bytes_accessed),
    )(x, w_enc, b_enc, w_map, b_map, w_dec, b_dec)

    # self.z_loss = torch.Tensor(1).zero_() -> constant zero buffer, no compute.
    z_loss = jnp.zeros((1,), dtype=jnp.float32)
    return recon, z, z_loss


def init_params(key, input_size, enc_hidden, latent):
    """Deterministic synthetic parameter init (shapes follow the config).

    Weights stored bf16 (MXU operands, half the HBM weight traffic); biases
    stay f32 (added to the f32 accumulators in-kernel).
    """
    k = jax.random.split(key, 6)
    scale = 0.02
    w_enc = (scale * jax.random.normal(k[0], (input_size, enc_hidden),
                                       jnp.float32)).astype(jnp.bfloat16)
    b_enc = scale * jax.random.normal(k[1], (1, enc_hidden), jnp.float32)
    w_map = (scale * jax.random.normal(k[2], (enc_hidden, latent),
                                       jnp.float32)).astype(jnp.bfloat16)
    b_map = scale * jax.random.normal(k[3], (1, latent), jnp.float32)
    w_dec = (scale * jax.random.normal(k[4], (latent, input_size),
                                       jnp.float32)).astype(jnp.bfloat16)
    b_dec = scale * jax.random.normal(k[5], (1, input_size), jnp.float32)
    return (w_enc, b_enc, w_map, b_map, w_dec, b_dec)


if __name__ == "__main__":
    # Small shapes consistent with the module's config keys:
    #   config['data']['input_size'][0]        -> 256
    #   config['model']['enc_hidden_size']     -> 128
    #   config['model']['latent_size']         -> 128
    batch = 8
    input_size = 256
    enc_hidden = 128
    latent = 128

    key = jax.random.PRNGKey(0)
    kx, kp = jax.random.split(key)
    x = jax.random.normal(kx, (batch, input_size), jnp.float32)
    params = init_params(kp, input_size, enc_hidden, latent)

    recon, z, z_loss = jax.jit(ae_forward)(x, params)
    jax.block_until_ready((recon, z, z_loss))

    # Pure-JAX reference (mirrors the kernel's bf16 operand casts; f32 accum).
    w_enc, b_enc, w_map, b_map, w_dec, b_dec = params
    xf = x.astype(jnp.bfloat16).astype(jnp.float32)
    h_ref = jnp.tanh(xf @ w_enc.astype(jnp.float32) + b_enc)
    z_ref = (h_ref.astype(jnp.bfloat16).astype(jnp.float32)
             @ w_map.astype(jnp.float32) + b_map)
    recon_ref = (z_ref.astype(jnp.bfloat16).astype(jnp.float32)
                 @ w_dec.astype(jnp.float32) + b_dec)

    z_f32 = z.astype(jnp.float32)
    recon_f32 = recon.astype(jnp.float32)
    assert jnp.allclose(z_f32, z_ref, atol=3e-3, rtol=3e-2), \
        float(jnp.max(jnp.abs(z_f32 - z_ref)))
    assert jnp.allclose(recon_f32, recon_ref, atol=3e-3, rtol=3e-2), \
        float(jnp.max(jnp.abs(recon_f32 - recon_ref)))
    assert recon.shape == (batch, input_size)
    assert z.shape == (batch, latent)
    assert z_loss.shape == (1,)

    print("KERNEL_OK")
</pallas_src>

<mosaic_0001>
module attributes {stable_mosaic.version = 11 : i64} {
  func.func @_ae_kernel(%arg0: i32, %arg1: memref<8x256xf32, #tpu.memory_space<vmem>>, %arg2: memref<256x128xbf16, #tpu.memory_space<vmem>>, %arg3: memref<1x128xf32, #tpu.memory_space<vmem>>, %arg4: memref<128x128xbf16, #tpu.memory_space<vmem>>, %arg5: memref<1x128xf32, #tpu.memory_space<vmem>>, %arg6: memref<128x256xbf16, #tpu.memory_space<vmem>>, %arg7: memref<1x256xf32, #tpu.memory_space<vmem>>, %arg8: memref<8x256xbf16, #tpu.memory_space<vmem>>, %arg9: memref<8x128xbf16, #tpu.memory_space<vmem>>) attributes {dimension_semantics = [#tpu.dimension_semantics<parallel>], iteration_bounds = array<i64: 1>, scalar_prefetch = 0 : i64, scratch_operands = 0 : i64, tpu.core_type = #tpu.core_type<tc>, window_params = [{transform_indices = @transform_0, window_bounds = array<i64: 8, 256>}, {pipeline_mode = #tpu.pipeline_mode<synchronous>, transform_indices = @transform_1, window_bounds = array<i64: 256, 128>}, {pipeline_mode = #tpu.pipeline_mode<synchronous>, transform_indices = @transform_2, window_bounds = array<i64: 1, 128>}, {pipeline_mode = #tpu.pipeline_mode<synchronous>, transform_indices = @transform_3, window_bounds = array<i64: 128, 128>}, {pipeline_mode = #tpu.pipeline_mode<synchronous>, transform_indices = @transform_4, window_bounds = array<i64: 1, 128>}, {pipeline_mode = #tpu.pipeline_mode<synchronous>, transform_indices = @transform_5, window_bounds = array<i64: 128, 256>}, {pipeline_mode = #tpu.pipeline_mode<synchronous>, transform_indices = @transform_6, window_bounds = array<i64: 1, 256>}, {transform_indices = @transform_7, window_bounds = array<i64: 8, 256>}, {transform_indices = @transform_8, window_bounds = array<i64: 8, 128>}]} {
    %c0 = arith.constant 0 : index
    %c0_0 = arith.constant 0 : index
    %0 = vector.load %arg1[%c0, %c0_0] : memref<8x256xf32, #tpu.memory_space<vmem>>, vector<8x256xf32>
    %1 = arith.truncf %0 : vector<8x256xf32> to vector<8x256xbf16>
    %c0_1 = arith.constant 0 : index
    %c0_2 = arith.constant 0 : index
    %2 = vector.load %arg2[%c0_1, %c0_2] : memref<256x128xbf16, #tpu.memory_space<vmem>>, vector<256x128xbf16>
    %cst = arith.constant dense<0.000000e+00> : vector<8x128xf32>
    %3 = tpu.matmul %1, %2, %cst {dimension_numbers = #tpu.dot_dimension_numbers<[1], [0], [0], [1], [0, 0, 1, 1], [], []>} : vector<8x256xbf16>, vector<256x128xbf16>, vector<8x128xf32> -> vector<8x128xf32>
    %c0_3 = arith.constant 0 : index
    %c0_4 = arith.constant 0 : index
    %4 = vector.load %arg3[%c0_3, %c0_4] : memref<1x128xf32, #tpu.memory_space<vmem>>, vector<1x128xf32>
    %5 = vector.broadcast %4 : vector<1x128xf32> to vector<8x128xf32>
    %6 = arith.addf %3, %5 : vector<8x128xf32>
    %7 = math.tanh %6 : vector<8x128xf32>
    %8 = arith.truncf %7 : vector<8x128xf32> to vector<8x128xbf16>
    %c0_5 = arith.constant 0 : index
    %c0_6 = arith.constant 0 : index
    %9 = vector.load %arg4[%c0_5, %c0_6] : memref<128x128xbf16, #tpu.memory_space<vmem>>, vector<128x128xbf16>
    %cst_7 = arith.constant dense<0.000000e+00> : vector<8x128xf32>
    %10 = tpu.matmul %8, %9, %cst_7 {dimension_numbers = #tpu.dot_dimension_numbers<[1], [0], [0], [1], [0, 0, 1, 1], [], []>} : vector<8x128xbf16>, vector<128x128xbf16>, vector<8x128xf32> -> vector<8x128xf32>
    %c0_8 = arith.constant 0 : index
    %c0_9 = arith.constant 0 : index
    %11 = vector.load %arg5[%c0_8, %c0_9] : memref<1x128xf32, #tpu.memory_space<vmem>>, vector<1x128xf32>
    %12 = vector.broadcast %11 : vector<1x128xf32> to vector<8x128xf32>
    %13 = arith.addf %10, %12 : vector<8x128xf32>
    %14 = arith.truncf %13 : vector<8x128xf32> to vector<8x128xbf16>
    %c0_10 = arith.constant 0 : index
    %c0_11 = arith.constant 0 : index
    %15 = vector.load %arg9[%c0_10, %c0_11] : memref<8x128xbf16, #tpu.memory_space<vmem>>, vector<8x128xbf16>
    tpu.vector_store %arg9[%c0_10, %c0_11], %14 {strides = array<i32>} : memref<8x128xbf16, #tpu.memory_space<vmem>>, vector<8x128xbf16>,
    %16 = arith.truncf %13 : vector<8x128xf32> to vector<8x128xbf16>
    %c0_12 = arith.constant 0 : index
    %c0_13 = arith.constant 0 : index
    %17 = vector.load %arg6[%c0_12, %c0_13] : memref<128x256xbf16, #tpu.memory_space<vmem>>, vector<128x256xbf16>
    %cst_14 = arith.constant dense<0.000000e+00> : vector<8x256xf32>
    %18 = tpu.matmul %16, %17, %cst_14 {dimension_numbers = #tpu.dot_dimension_numbers<[1], [0], [0], [1], [0, 0, 1, 1], [], []>} : vector<8x128xbf16>, vector<128x256xbf16>, vector<8x256xf32> -> vector<8x256xf32>
    %c0_15 = arith.constant 0 : index
    %c0_16 = arith.constant 0 : index
    %19 = vector.load %arg7[%c0_15, %c0_16] : memref<1x256xf32, #tpu.memory_space<vmem>>, vector<1x256xf32>
    %20 = vector.broadcast %19 : vector<1x256xf32> to vector<8x256xf32>
    %21 = arith.addf %18, %20 : vector<8x256xf32>
    %22 = arith.truncf %21 : vector<8x256xf32> to vector<8x256xbf16>
    %c0_17 = arith.constant 0 : index
    %c0_18 = arith.constant 0 : index
    %23 = vector.load %arg8[%c0_17, %c0_18] : memref<8x256xbf16, #tpu.memory_space<vmem>>, vector<8x256xbf16>
    tpu.vector_store %arg8[%c0_17, %c0_18], %22 {strides = array<i32>} : memref<8x256xbf16, #tpu.memory_space<vmem>>, vector<8x256xbf16>,
    return
  }
  func.func @transform_0(%arg0: i32) -> (i32, i32) {
    %c0_i32 = arith.constant 0 : i32
    %c0_i32_0 = arith.constant 0 : i32
    return %arg0, %c0_i32 : i32, i32
  }
  func.func @transform_1(%arg0: i32) -> (i32, i32) {
    %c0_i32 = arith.constant 0 : i32
    %c0_i32_0 = arith.constant 0 : i32
    %c0_i32_1 = arith.constant 0 : i32
    return %c0_i32, %c0_i32_0 : i32, i32
  }
  func.func @transform_2(%arg0: i32) -> (i32, i32) {
    %c0_i32 = arith.constant 0 : i32
    %c0_i32_0 = arith.constant 0 : i32
    %c0_i32_1 = arith.constant 0 : i32
    return %c0_i32, %c0_i32_0 : i32, i32
  }
  func.func @transform_3(%arg0: i32) -> (i32, i32) {
    %c0_i32 = arith.constant 0 : i32
    %c0_i32_0 = arith.constant 0 : i32
    %c0_i32_1 = arith.constant 0 : i32
    return %c0_i32, %c0_i32_0 : i32, i32
  }
  func.func @transform_4(%arg0: i32) -> (i32, i32) {
    %c0_i32 = arith.constant 0 : i32
    %c0_i32_0 = arith.constant 0 : i32
    %c0_i32_1 = arith.constant 0 : i32
    return %c0_i32, %c0_i32_0 : i32, i32
  }
  func.func @transform_5(%arg0: i32) -> (i32, i32) {
    %c0_i32 = arith.constant 0 : i32
    %c0_i32_0 = arith.constant 0 : i32
    %c0_i32_1 = arith.constant 0 : i32
    return %c0_i32, %c0_i32_0 : i32, i32
  }
  func.func @transform_6(%arg0: i32) -> (i32, i32) {
    %c0_i32 = arith.constant 0 : i32
    %c0_i32_0 = arith.constant 0 : i32
    %c0_i32_1 = arith.constant 0 : i32
    return %c0_i32, %c0_i32_0 : i32, i32
  }
  func.func @transform_7(%arg0: i32) -> (i32, i32) {
    %c0_i32 = arith.constant 0 : i32
    %c0_i32_0 = arith.constant 0 : i32
    return %arg0, %c0_i32 : i32, i32
  }
  func.func @transform_8(%arg0: i32) -> (i32, i32) {
    %c0_i32 = arith.constant 0 : i32
    %c0_i32_0 = arith.constant 0 : i32
    return %arg0, %c0_i32 : i32, i32
  }
}

</mosaic_0001>

<llo_original>
// kernel: ae_forward.1
$region0: #{ae_forward.1}
  #allocation0 [shape = 'u32[]', space=smem, size = 0x4, offset = 0x4, fixed_abs, tag = 'smem constant byte address 0x4 - core index']
  #allocation1 [shape = 'u32[144,128]{1,0:T(1,128)}', space=vmem, size = 0x12000, scoped, tag = 'internal scratch']
  %s0 = inlined_call_operand.hbm [shape: f32[8,256], index: 0, kind: input, shape index: {}]
  %s1 = inlined_call_operand.hbm [shape: bf16[256,128], index: 1, kind: input, shape index: {}]
  %s2 = inlined_call_operand.vmem [shape: f32[1,128], index: 2, kind: input, shape index: {}]
  %s3 = inlined_call_operand.hbm [shape: bf16[128,128], index: 3, kind: input, shape index: {}]
  %s4 = inlined_call_operand.vmem [shape: f32[1,128], index: 4, kind: input, shape index: {}]
  %s5 = inlined_call_operand.hbm [shape: bf16[128,256], index: 5, kind: input, shape index: {}]
  %s6 = inlined_call_operand.vmem [shape: f32[1,256], index: 6, kind: input, shape index: {}]
  %s7 = inlined_call_operand.hbm [shape: bf16[8,256], index: 7, kind: output, shape index: {0}]
  %s8 = inlined_call_operand.hbm [shape: bf16[8,128], index: 8, kind: output, shape index: {1}]
  %9 = xla_tuple %s7, %s8
  %s10 = sld [smem:[#allocation0]]
  $region62: #{ae_forward.1} parent=0
    _
  %s12 = ssub.s32 1, %s10
  %s13 = scalar_select 0, %s12, %s10
  $region1: #{ae_forward.1} parent=0
    #allocation2 [shape = 'u8[8192]{0}', space=vmem, size = 0x2000, scoped, tag = 'input window, operand 0, single buffered']
    #allocation3 [shape = 's32[1]{0}', space=sflag, size = 0x4, scoped, tag = 'scoped memory for ae_forward.1']
    #allocation4 [shape = 's32[1]{0}', space=sflag, size = 0x4, scoped, tag = 'scoped memory for ae_forward.1']
    #allocation5 [shape = 'u8[65536]{0}', space=vmem, size = 0x10000, scoped, tag = 'input window, operand 1, single buffered']
    #allocation6 [shape = 's32[1]{0}', space=sflag, size = 0x4, scoped, tag = 'scoped memory for ae_forward.1']
    #allocation7 [shape = 'u8[32768]{0}', space=vmem, size = 0x8000, scoped, tag = 'input window, operand 3, single buffered']
    #allocation8 [shape = 'u8[65536]{0}', space=vmem, size = 0x10000, scoped, tag = 'input window, operand 5, single buffered']
    #allocation9 [shape = 's32[1]{0}', space=sflag, size = 0x4, scoped, tag = 'scoped memory for ae_forward.1']
    #allocation10 [shape = 'u8[4096]{0}', space=vmem, size = 0x1000, scoped, tag = 'output window, operand 0, single buffered']
    #allocation11 [shape = 'u8[2048]{0}', space=vmem, size = 0x800, scoped, tag = 'output window, operand 1, single buffered']
    #allocation12 [shape = 's32[1]{0}', space=sflag, size = 0x4, scoped, tag = 'scoped memory for ae_forward.1']
    %14 = vsyncpa [#allocation3], 0
    %15 = vsyncpa [#allocation6], 0
    %16 = vsyncpa [#allocation9], 0
    %17 = vsyncpa [#allocation4], 0
    %18 = vsyncpa [#allocation12], 0
    // Predicated region
    $region2: #{ae_forward.1} parent=1 // pred_check
      _
    $region3: #{ae_forward.1} parent=1 // pred_check_branch
      %20 = sbr.rel (0) target = $region5
    $region4: #{ae_forward.1} parent=1 // pred_region
      %s22 = ssub.s32 256, 256
      %23 = vsyncadd [#allocation3], %s22
      %s25 = sshll.u32 [#allocation2], 4
      %s26 = int_to_ptr.vmem [resolvable:$true] %s25
      %28 = dma.hbm_to_vmem [thread:$0]  %s0, 256, %s26, [#allocation3]
    $region5: #{ae_forward.1} parent=1 // pred_fallthru
      _
    // Predicated region
    $region6: #{ae_forward.1} parent=1 // pred_check
      _
    $region7: #{ae_forward.1} parent=1 // pred_check_branch
      %30 = sbr.rel (0) target = $region9
    $region8: #{ae_forward.1} parent=1 // pred_region
      %s32 = ssub.s32 2048, 2048
      %33 = vsyncadd [#allocation6], %s32
      %s34 = sshll.u32 [#allocation5], 4
      %s35 = int_to_ptr.vmem [resolvable:$true] %s34
      %40 = dma.hbm_to_vmem [thread:$0]  %s1, 2048, %s35, [#allocation6], 64, 64, 4
    $region9: #{ae_forward.1} parent=1 // pred_fallthru
      _
    // Predicated region
    $region10: #{ae_forward.1} parent=1 // pred_check
      _
    $region11: #{ae_forward.1} parent=1 // pred_check_branch
      %42 = sbr.rel (0) target = $region13
    $region12: #{ae_forward.1} parent=1 // pred_region
      _
    $region13: #{ae_forward.1} parent=1 // pred_fallthru
      _
    // Predicated region
    $region14: #{ae_forward.1} parent=1 // pred_check
      _
    $region15: #{ae_forward.1} parent=1 // pred_check_branch
      %44 = sbr.rel (0) target = $region17
    $region16: #{ae_forward.1} parent=1 // pred_region
      %s46 = ssub.s32 1024, 1024
      %47 = vsyncadd [#allocation6], %s46
      %s48 = sshll.u32 [#allocation7], 4
      %s49 = int_to_ptr.vmem [resolvable:$true] %s48
      %54 = dma.hbm_to_vmem [thread:$0]  %s3, 1024, %s49, [#allocation6], 64, 64, 4
    $region17: #{ae_forward.1} parent=1 // pred_fallthru
      _
    // Predicated region
    $region18: #{ae_forward.1} parent=1 // pred_check
      _
    $region19: #{ae_forward.1} parent=1 // pred_check_branch
      %56 = sbr.rel (0) target = $region21
    $region20: #{ae_forward.1} parent=1 // pred_region
      _
    $region21: #{ae_forward.1} parent=1 // pred_fallthru
      _
    // Predicated region
    $region22: #{ae_forward.1} parent=1 // pred_check
      _
    $region23: #{ae_forward.1} parent=1 // pred_check_branch
      %58 = sbr.rel (0) target = $region25
    $region24: #{ae_forward.1} parent=1 // pred_region
      %s60 = ssub.s32 2048, 2048
      %61 = vsyncadd [#allocation9], %s60
      %s62 = sshll.u32 [#allocation8], 4
      %s63 = int_to_ptr.vmem [resolvable:$true] %s62
      %68 = dma.hbm_to_vmem [thread:$0]  %s5, 2048, %s63, [#allocation9], 128, 128, 8
    $region25: #{ae_forward.1} parent=1 // pred_fallthru
      _
    // Predicated region
    $region26: #{ae_forward.1} parent=1 // pred_check
      _
    $region27: #{ae_forward.1} parent=1 // pred_check_branch
      %70 = sbr.rel (0) target = $region29
    $region28: #{ae_forward.1} parent=1 // pred_region
      _
    $region29: #{ae_forward.1} parent=1 // pred_fallthru
      _
    // Predicated region
    $region30: #{ae_forward.1} parent=1 // pred_check
      _
    $region31: #{ae_forward.1} parent=1 // pred_check_branch
      %72 = sbr.rel (0) target = $region33
    $region32: #{ae_forward.1} parent=1 // pred_region
      %73 = dma.done [#allocation3], 256
    $region33: #{ae_forward.1} parent=1 // pred_fallthru
      _
    // Predicated region
    $region34: #{ae_forward.1} parent=1 // pred_check
      _
    $region35: #{ae_forward.1} parent=1 // pred_check_branch
      %75 = sbr.rel (0) target = $region37
    $region36: #{ae_forward.1} parent=1 // pred_region
      %76 = dma.done [#allocation6], 2048
    $region37: #{ae_forward.1} parent=1 // pred_fallthru
      _
    // Predicated region
    $region38: #{ae_forward.1} parent=1 // pred_check
      _
    $region39: #{ae_forward.1} parent=1 // pred_check_branch
      %78 = sbr.rel (0) target = $region41
    $region40: #{ae_forward.1} parent=1 // pred_region
      %79 = dma.done [#allocation6], 1024
    $region41: #{ae_forward.1} parent=1 // pred_fallthru
      _
    // Predicated region
    $region42: #{ae_forward.1} parent=1 // pred_check
      _
    $region43: #{ae_forward.1} parent=1 // pred_check_branch
      %81 = sbr.rel (0) target = $region45
    $region44: #{ae_forward.1} parent=1 // pred_region
      %82 = dma.done [#allocation9], 2048
    $region45: #{ae_forward.1} parent=1 // pred_fallthru
      _
    %v84 = vld [vmem:[#allocation2] sm:$0xff]
    %v85 = vld [vmem:[#allocation2 + $0x8] sm:$0xff]
    %v86 = vpack.c.bf16 %v84, %v84
    %v87 = vpack.c.bf16 %v85, %v85
    %v88 = vld [vmem:[#allocation5] sm:$0xf]
    %v89 = vld [vmem:[#allocation5 + $0x4] sm:$0xf]
    %v90 = vld [vmem:[#allocation5 + $0x8] sm:$0xf]
    %v91 = vld [vmem:[#allocation5 + $0xc] sm:$0xf]
    %v92 = vld [vmem:[#allocation5 + $0x10] sm:$0xf]
    %v93 = vld [vmem:[#allocation5 + $0x14] sm:$0xf]
    %v94 = vld [vmem:[#allocation5 + $0x18] sm:$0xf]
    %v95 = vld [vmem:[#allocation5 + $0x1c] sm:$0xf]
    %v96 = vld [vmem:[#allocation5 + $0x20] sm:$0xf]
    %v97 = vld [vmem:[#allocation5 + $0x24] sm:$0xf]
    %v98 = vld [vmem:[#allocation5 + $0x28] sm:$0xf]
    %v99 = vld [vmem:[#allocation5 + $0x2c] sm:$0xf]
    %v100 = vld [vmem:[#allocation5 + $0x30] sm:$0xf]
    %v101 = vld [vmem:[#allocation5 + $0x34] sm:$0xf]
    %v102 = vld [vmem:[#allocation5 + $0x38] sm:$0xf]
    %v103 = vld [vmem:[#allocation5 + $0x3c] sm:$0xf]
    %v104 = vld [vmem:[#allocation5 + $0x40] sm:$0xf]
    %v105 = vld [vmem:[#allocation5 + $0x44] sm:$0xf]
    %v106 = vld [vmem:[#allocation5 + $0x48] sm:$0xf]
    %v107 = vld [vmem:[#allocation5 + $0x4c] sm:$0xf]
    %v108 = vld [vmem:[#allocation5 + $0x50] sm:$0xf]
    %v109 = vld [vmem:[#allocation5 + $0x54] sm:$0xf]
    %v110 = vld [vmem:[#allocation5 + $0x58] sm:$0xf]
    %v111 = vld [vmem:[#allocation5 + $0x5c] sm:$0xf]
    %v112 = vld [vmem:[#allocation5 + $0x60] sm:$0xf]
    %v113 = vld [vmem:[#allocation5 + $0x64] sm:$0xf]
    %v114 = vld [vmem:[#allocation5 + $0x68] sm:$0xf]
    %v115 = vld [vmem:[#allocation5 + $0x6c] sm:$0xf]
    %v116 = vld [vmem:[#allocation5 + $0x70] sm:$0xf]
    %v117 = vld [vmem:[#allocation5 + $0x74] sm:$0xf]
    %v118 = vld [vmem:[#allocation5 + $0x78] sm:$0xf]
    %v119 = vld [vmem:[#allocation5 + $0x7c] sm:$0xf]
    %v120 = vld [vmem:[%s2] sm:$0x1]
    %v122 = vlaneseq
    %v123 = vshrl.u32 %v122, 7
    %v124 = vsub.s32 0, %v123
    %v125 = vrot.slane %v120, %v124
    %v159 = vunpack.c.l.b16 %v88
    %v160 = vunpack.c.l.b16 %v89
    %v161 = vunpack.c.l.b16 %v90
    %v162 = vunpack.c.l.b16 %v91
    %v163 = vunpack.c.l.b16 %v92
    %v164 = vunpack.c.l.b16 %v93
    %v165 = vunpack.c.l.b16 %v94
    %v166 = vunpack.c.l.b16 %v95
    %v167 = vunpack.c.l.b16 %v96
    %v168 = vunpack.c.l.b16 %v97
    %v169 = vunpack.c.l.b16 %v98
    %v170 = vunpack.c.l.b16 %v99
    %v171 = vunpack.c.l.b16 %v100
    %v172 = vunpack.c.l.b16 %v101
    %v173 = vunpack.c.l.b16 %v102
    %v174 = vunpack.c.l.b16 %v103
    %v175 = vunpack.c.l.b16 %v104
    %v176 = vunpack.c.l.b16 %v105
    %v177 = vunpack.c.l.b16 %v106
    %v178 = vunpack.c.l.b16 %v107
    %v179 = vunpack.c.l.b16 %v108
    %v180 = vunpack.c.l.b16 %v109
    %v181 = vunpack.c.l.b16 %v110
    %v182 = vunpack.c.l.b16 %v111
    %v183 = vunpack.c.l.b16 %v112
    %v184 = vunpack.c.l.b16 %v113
    %v185 = vunpack.c.l.b16 %v114
    %v186 = vunpack.c.l.b16 %v115
    %v187 = vunpack.c.l.b16 %v116
    %v188 = vunpack.c.l.b16 %v117
    %v189 = vunpack.c.l.b16 %v118
    %v190 = vunpack.c.l.b16 %v119
    %v191 = vpack.c.b16 %v160, %v159
    %v192 = vpack.c.b16 %v162, %v161
    %v193 = vpack.c.b16 %v164, %v163
    %v194 = vpack.c.b16 %v166, %v165
    %v195 = vpack.c.b16 %v168, %v167
    %v196 = vpack.c.b16 %v170, %v169
    %v197 = vpack.c.b16 %v172, %v171
    %v198 = vpack.c.b16 %v174, %v173
    %v199 = vpack.c.b16 %v176, %v175
    %v200 = vpack.c.b16 %v178, %v177
    %v201 = vpack.c.b16 %v180, %v179
    %v202 = vpack.c.b16 %v182, %v181
    %v203 = vpack.c.b16 %v184, %v183
    %v204 = vpack.c.b16 %v186, %v185
    %v205 = vpack.c.b16 %v188, %v187
    %v206 = vpack.c.b16 %v190, %v189
    %223 = vmatprep.subr.bf16.mxu0 0
    %224 = vmatpush1.bf16.msra.mxu0 %v191
    %225 = vmatprep.subr.bf16.mxu0 0
    %226 = vmatpush1.bf16.msra.mxu0 %v192
    %227 = vmatprep.subr.bf16.mxu0 0
    %228 = vmatpush1.bf16.msra.mxu0 %v193
    %229 = vmatprep.subr.bf16.mxu0 0
    %230 = vmatpush1.bf16.msra.mxu0 %v194
    %231 = vmatprep.subr.bf16.mxu0 0
    %232 = vmatpush1.bf16.msra.mxu0 %v195
    %233 = vmatprep.subr.bf16.mxu0 0
    %234 = vmatpush1.bf16.msra.mxu0 %v196
    %235 = vmatprep.subr.bf16.mxu0 0
    %236 = vmatpush1.bf16.msra.mxu0 %v197
    %237 = vmatprep.subr.bf16.mxu0 0
    %238 = vmatpush1.bf16.msra.mxu0 %v198
    %239 = vmatprep.subr.bf16.mxu0 0
    %240 = vmatpush1.bf16.msra.mxu0 %v199
    %241 = vmatprep.subr.bf16.mxu0 0
    %242 = vmatpush1.bf16.msra.mxu0 %v200
    %243 = vmatprep.subr.bf16.mxu0 0
    %244 = vmatpush1.bf16.msra.mxu0 %v201
    %245 = vmatprep.subr.bf16.mxu0 0
    %246 = vmatpush1.bf16.msra.mxu0 %v202
    %247 = vmatprep.subr.bf16.mxu0 0
    %248 = vmatpush1.bf16.msra.mxu0 %v203
    %249 = vmatprep.subr.bf16.mxu0 0
    %250 = vmatpush1.bf16.msra.mxu0 %v204
    %251 = vmatprep.subr.bf16.mxu0 0
    %252 = vmatpush1.bf16.msra.mxu0 %v205
    %253 = vmatprep.subr.bf16.mxu0 0
    %254 = vmatpush1.bf16.msra.mxu0 %v206
    %255 = vmatprep.mubr.bf16.mxu0 %v87
    %256 = vmatmul.mubr.bf16.gmra.mrb[0].mxu0 %v86
    %v257 = vpop.f32.mrb[0].mxu0
    %v258 = vadd.f32 %v125, %v257
    %v259 = vpop.f32.mrb[0].mxu0
    %v260 = vpop.f32.mrb[0].mxu0
    %v261 = vpop.f32.mrb[0].mxu0
    %262 = vdwg.mxu0
    %v263 = vtanh.pop %v258
    %v264 = vpack.c.bf16 %v263, %v263
    %v265 = vld [vmem:[#allocation7] sm:$0xf]
    %v266 = vld [vmem:[#allocation7 + $0x4] sm:$0xf]
    %v267 = vld [vmem:[#allocation7 + $0x8] sm:$0xf]
    %v268 = vld [vmem:[#allocation7 + $0xc] sm:$0xf]
    %v269 = vld [vmem:[#allocation7 + $0x10] sm:$0xf]
    %v270 = vld [vmem:[#allocation7 + $0x14] sm:$0xf]
    %v271 = vld [vmem:[#allocation7 + $0x18] sm:$0xf]
    %v272 = vld [vmem:[#allocation7 + $0x1c] sm:$0xf]
    %v273 = vld [vmem:[#allocation7 + $0x20] sm:$0xf]
    %v274 = vld [vmem:[#allocation7 + $0x24] sm:$0xf]
    %v275 = vld [vmem:[#allocation7 + $0x28] sm:$0xf]
    %v276 = vld [vmem:[#allocation7 + $0x2c] sm:$0xf]
    %v277 = vld [vmem:[#allocation7 + $0x30] sm:$0xf]
    %v278 = vld [vmem:[#allocation7 + $0x34] sm:$0xf]
    %v279 = vld [vmem:[#allocation7 + $0x38] sm:$0xf]
    %v280 = vld [vmem:[#allocation7 + $0x3c] sm:$0xf]
    %v281 = vld [vmem:[%s4] sm:$0x1]
    %v283 = vlaneseq
    %v284 = vshrl.u32 %v283, 7
    %v285 = vsub.s32 0, %v284
    %v286 = vrot.slane %v281, %v285
    %v304 = vunpack.c.l.b16 %v265
    %v305 = vunpack.c.l.b16 %v266
    %v306 = vunpack.c.l.b16 %v267
    %v307 = vunpack.c.l.b16 %v268
    %v308 = vunpack.c.l.b16 %v269
    %v309 = vunpack.c.l.b16 %v270
    %v310 = vunpack.c.l.b16 %v271
    %v311 = vunpack.c.l.b16 %v272
    %v312 = vunpack.c.l.b16 %v273
    %v313 = vunpack.c.l.b16 %v274
    %v314 = vunpack.c.l.b16 %v275
    %v315 = vunpack.c.l.b16 %v276
    %v316 = vunpack.c.l.b16 %v277
    %v317 = vunpack.c.l.b16 %v278
    %v318 = vunpack.c.l.b16 %v279
    %v319 = vunpack.c.l.b16 %v280
    %v320 = vpack.c.b16 %v305, %v304
    %v321 = vpack.c.b16 %v307, %v306
    %v322 = vpack.c.b16 %v309, %v308
    %v323 = vpack.c.b16 %v311, %v310
    %v324 = vpack.c.b16 %v313, %v312
    %v325 = vpack.c.b16 %v315, %v314
    %v326 = vpack.c.b16 %v317, %v316
    %v327 = vpack.c.b16 %v319, %v318
    %336 = vmatprep.subr.bf16.mxu0 0
    %337 = vmatpush1.bf16.msra.mxu0 %v320
    %338 = vmatprep.subr.bf16.mxu0 0
    %339 = vmatpush1.bf16.msra.mxu0 %v321
    %340 = vmatprep.subr.bf16.mxu0 0
    %341 = vmatpush1.bf16.msra.mxu0 %v322
    %342 = vmatprep.subr.bf16.mxu0 0
    %343 = vmatpush1.bf16.msra.mxu0 %v323
    %344 = vmatprep.subr.bf16.mxu0 0
    %345 = vmatpush1.bf16.msra.mxu0 %v324
    %346 = vmatprep.subr.bf16.mxu0 0
    %347 = vmatpush1.bf16.msra.mxu0 %v325
    %348 = vmatprep.subr.bf16.mxu0 0
    %349 = vmatpush1.bf16.msra.mxu0 %v326
    %350 = vmatprep.subr.bf16.mxu0 0
    %351 = vmatpush1.bf16.msra.mxu0 %v327
    %352 = vmatprep.subr.bf16.mxu0 0
    %353 = vmatpush1.bf16.msra.mxu0 0
    %354 = vmatprep.subr.bf16.mxu0 0
    %355 = vmatpush1.bf16.msra.mxu0 0
    %356 = vmatprep.subr.bf16.mxu0 0
    %357 = vmatpush1.bf16.msra.mxu0 0
    %358 = vmatprep.subr.bf16.mxu0 0
    %359 = vmatpush1.bf16.msra.mxu0 0
    %360 = vmatprep.subr.bf16.mxu0 0
    %361 = vmatpush1.bf16.msra.mxu0 0
    %362 = vmatprep.subr.bf16.mxu0 0
    %363 = vmatpush1.bf16.msra.mxu0 0
    %364 = vmatprep.subr.bf16.mxu0 0
    %365 = vmatpush1.bf16.msra.mxu0 0
    %366 = vmatprep.subr.bf16.mxu0 0
    %367 = vmatpush1.bf16.msra.mxu0 0
    %368 = vmatprep.mubr.bf16.mxu0 0
    %369 = vmatmul.mubr.bf16.gmra.mrb[0].mxu0 %v264
    %v370 = vpop.f32.mrb[0].mxu0
    %v371 = vadd.f32 %v286, %v370
    %v372 = vpop.f32.mrb[0].mxu0
    %v373 = vpop.f32.mrb[0].mxu0
    %v374 = vpop.f32.mrb[0].mxu0
    %375 = vdwg.mxu0
    %v376 = vpack.c.bf16 %v371, %v371
    %377 = vst [vmem:[#allocation11] sm:$0xf] %v376
    %v378 = vld [vmem:[#allocation8] sm:$0xff]
    %v379 = vld [vmem:[#allocation8 + $0x8] sm:$0xff]
    %v380 = vld [vmem:[#allocation8 + $0x10] sm:$0xff]
    %v381 = vld [vmem:[#allocation8 + $0x18] sm:$0xff]
    %v382 = vld [vmem:[#allocation8 + $0x20] sm:$0xff]
    %v383 = vld [vmem:[#allocation8 + $0x28] sm:$0xff]
    %v384 = vld [vmem:[#allocation8 + $0x30] sm:$0xff]
    %v385 = vld [vmem:[#allocation8 + $0x38] sm:$0xff]
    %v386 = vld [vmem:[#allocation8 + $0x40] sm:$0xff]
    %v387 = vld [vmem:[#allocation8 + $0x48] sm:$0xff]
    %v388 = vld [vmem:[#allocation8 + $0x50] sm:$0xff]
    %v389 = vld [vmem:[#allocation8 + $0x58] sm:$0xff]
    %v390 = vld [vmem:[#allocation8 + $0x60] sm:$0xff]
    %v391 = vld [vmem:[#allocation8 + $0x68] sm:$0xff]
    %v392 = vld [vmem:[#allocation8 + $0x70] sm:$0xff]
    %v393 = vld [vmem:[#allocation8 + $0x78] sm:$0xff]
    %v394 = vld [vmem:[%s6] sm:$0x3]
    %v396 = vlaneseq
    %v397 = vshrl.u32 %v396, 7
    %v398 = vsub.s32 0, %v397
    %v399 = vrot.slane %v394, %v398
    %v400 = vlaneseq
    %v401 = vshrl.u32 %v400, 7
    %v402 = vsub.s32 1, %v401
    %v403 = vrot.slane %v394, %v402
    %v422 = vunpack.c.l.b16 %v378
    %v423 = vunpack.c.h.b16 %v378
    %v424 = vunpack.c.l.b16 %v379
    %v425 = vunpack.c.h.b16 %v379
    %v426 = vunpack.c.l.b16 %v380
    %v427 = vunpack.c.h.b16 %v380
    %v428 = vunpack.c.l.b16 %v381
    %v429 = vunpack.c.h.b16 %v381
    %v430 = vunpack.c.l.b16 %v382
    %v431 = vunpack.c.h.b16 %v382
    %v432 = vunpack.c.l.b16 %v383
    %v433 = vunpack.c.h.b16 %v383
    %v434 = vunpack.c.l.b16 %v384
    %v435 = vunpack.c.h.b16 %v384
    %v436 = vunpack.c.l.b16 %v385
    %v437 = vunpack.c.h.b16 %v385
    %v438 = vunpack.c.l.b16 %v386
    %v439 = vunpack.c.h.b16 %v386
    %v440 = vunpack.c.l.b16 %v387
    %v441 = vunpack.c.h.b16 %v387
    %v442 = vunpack.c.l.b16 %v388
    %v443 = vunpack.c.h.b16 %v388
    %v444 = vunpack.c.l.b16 %v389
    %v445 = vunpack.c.h.b16 %v389
    %v446 = vunpack.c.l.b16 %v390
    %v447 = vunpack.c.h.b16 %v390
    %v448 = vunpack.c.l.b16 %v391
    %v449 = vunpack.c.h.b16 %v391
    %v450 = vunpack.c.l.b16 %v392
    %v451 = vunpack.c.h.b16 %v392
    %v452 = vunpack.c.l.b16 %v393
    %v453 = vunpack.c.h.b16 %v393
    %v454 = vpack.c.b16 %v424, %v422
    %v455 = vpack.c.b16 %v425, %v423
    %v456 = vpack.c.b16 %v428, %v426
    %v457 = vpack.c.b16 %v429, %v427
    %v458 = vpack.c.b16 %v432, %v430
    %v459 = vpack.c.b16 %v433, %v431
    %v460 = vpack.c.b16 %v436, %v434
    %v461 = vpack.c.b16 %v437, %v435
    %v462 = vpack.c.b16 %v440, %v438
    %v463 = vpack.c.b16 %v441, %v439
    %v464 = vpack.c.b16 %v444, %v442
    %v465 = vpack.c.b16 %v445, %v443
    %v466 = vpack.c.b16 %v448, %v446
    %v467 = vpack.c.b16 %v449, %v447
    %v468 = vpack.c.b16 %v452, %v450
    %v469 = vpack.c.b16 %v453, %v451
    %486 = vmatprep.subr.bf16.mxu0 %v455
    %487 = vmatpush1.bf16.msra.mxu0 %v454
    %488 = vmatprep.subr.bf16.mxu0 %v457
    %489 = vmatpush1.bf16.msra.mxu0 %v456
    %490 = vmatprep.subr.bf16.mxu0 %v459
    %491 = vmatpush1.bf16.msra.mxu0 %v458
    %492 = vmatprep.subr.bf16.mxu0 %v461
    %493 = vmatpush1.bf16.msra.mxu0 %v460
    %494 = vmatprep.subr.bf16.mxu0 %v463
    %495 = vmatpush1.bf16.msra.mxu0 %v462
    %496 = vmatprep.subr.bf16.mxu0 %v465
    %497 = vmatpush1.bf16.msra.mxu0 %v464
    %498 = vmatprep.subr.bf16.mxu0 %v467
    %499 = vmatpush1.bf16.msra.mxu0 %v466
    %500 = vmatprep.subr.bf16.mxu0 %v469
    %501 = vmatpush1.bf16.msra.mxu0 %v468
    %502 = vmatprep.subr.bf16.mxu0 0
    %503 = vmatpush1.bf16.msra.mxu0 0
    %504 = vmatprep.subr.bf16.mxu0 0
    %505 = vmatpush1.bf16.msra.mxu0 0
    %506 = vmatprep.subr.bf16.mxu0 0
    %507 = vmatpush1.bf16.msra.mxu0 0
    %508 = vmatprep.subr.bf16.mxu0 0
    %509 = vmatpush1.bf16.msra.mxu0 0
    %510 = vmatprep.subr.bf16.mxu0 0
    %511 = vmatpush1.bf16.msra.mxu0 0
    %512 = vmatprep.subr.bf16.mxu0 0
    %513 = vmatpush1.bf16.msra.mxu0 0
    %514 = vmatprep.subr.bf16.mxu0 0
    %515 = vmatpush1.bf16.msra.mxu0 0
    %516 = vmatprep.subr.bf16.mxu0 0
    %517 = vmatpush1.bf16.msra.mxu0 0
    %518 = vmatprep.mubr.bf16.mxu0 0
    %519 = vmatmul.mubr.bf16.gmra.mrb[0].mxu0 %v376
    %v520 = vpop.f32.mrb[0].mxu0
    %v521 = vadd.f32 %v399, %v520
    %v522 = vpop.f32.mrb[0].mxu0
    %v523 = vadd.f32 %v403, %v522
    %v524 = vpop.f32.mrb[0].mxu0
    %v525 = vpop.f32.mrb[0].mxu0
    %526 = vdwg.mxu0
    %v527 = vpack.c.bf16 %v521, %v521
    %v528 = vpack.c.bf16 %v523, %v523
    %v531 = vunpack.c.l.b16 %v527
    %v532 = vunpack.c.l.b16 %v528
    %v533 = vpack.c.b16 %v532, %v531
    %535 = vst [vmem:[#allocation10] sm:$0xff] %v533
    // Predicated region
    $region46: #{ae_forward.1} parent=1 // pred_check
      _
    $region47: #{ae_forward.1} parent=1 // pred_check_branch
      %537 = sbr.rel (0) target = $region49
    $region48: #{ae_forward.1} parent=1 // pred_region
      %s539 = ssub.s32 128, 128
      %540 = vsyncadd [#allocation4], %s539
      %s542 = sshll.u32 [#allocation10], 4
      %s543 = int_to_ptr.vmem [resolvable:$true] %s542
      %545 = dma.vmem_to_hbm [thread:$0]  %s543, 128, %s7, [#allocation4]
    $region49: #{ae_forward.1} parent=1 // pred_fallthru
      _
    // Predicated region
    $region50: #{ae_forward.1} parent=1 // pred_check
      _
    $region51: #{ae_forward.1} parent=1 // pred_check_branch
      %547 = sbr.rel (0) target = $region53
    $region52: #{ae_forward.1} parent=1 // pred_region
      %s549 = ssub.s32 64, 64
      %550 = vsyncadd [#allocation12], %s549
      %s552 = sshll.u32 [#allocation11], 4
      %s553 = int_to_ptr.vmem [resolvable:$true] %s552
      %555 = dma.vmem_to_hbm [thread:$0]  %s553, 64, %s8, [#allocation12]
    $region53: #{ae_forward.1} parent=1 // pred_fallthru
      _
    // Predicated region
    $region54: #{ae_forward.1} parent=1 // pred_check
      _
    $region55: #{ae_forward.1} parent=1 // pred_check_branch
      %557 = sbr.rel (0) target = $region57
    $region56: #{ae_forward.1} parent=1 // pred_region
      %558 = dma.done [#allocation4], 128
    $region57: #{ae_forward.1} parent=1 // pred_fallthru
      _
    // Predicated region
    $region58: #{ae_forward.1} parent=1 // pred_check
      _
    $region59: #{ae_forward.1} parent=1 // pred_check_branch
      %560 = sbr.rel (0) target = $region61
    $region60: #{ae_forward.1} parent=1 // pred_region
      %561 = dma.done [#allocation12], 64
    $region61: #{ae_forward.1} parent=1 // pred_fallthru
      _
    %562 = vsyncpa [#allocation3], 1
    %563 = vsyncpa [#allocation6], 1
    %564 = vsyncpa [#allocation9], 1
    %565 = vsyncpa [#allocation4], 1
    %566 = vsyncpa [#allocation12], 1

</llo_original>
